<compile_context>
chip_gen: v5e
topology: v5e:2x2
jax: 0.10.0
libtpu: 0.0.40
codegen_flags: <defaults>
</compile_context>

<pallas_src>
import functools

import jax
import jax.numpy as jnp
from jax import lax
from jax.experimental import pallas as pl
from jax.experimental.pallas import tpu as pltpu


def _patch_proj_kernel(x_ref, w_ref, b_ref, o_ref, stage_ref, a_ref):
    """One grid step: all patches in R consecutive patch-rows of one image.

    x_ref    : (1, C, R*P, W)        input activations (original NCHW layout)
    w_ref    : (K, E_pad)  bf16      weight, K = P*C*P, k = kw*(C*P) + c*P + kh
    b_ref    : (1, E_pad)  f32       bias
    o_ref    : (1, 1, M, E_pad)      output patches of this chunk, M = R*nw
    stage_ref: (M*P, C*P)  f32       scratch: transposed slabs, row = m*P + kw
    a_ref    : (M, K)      bf16      scratch: unit-stride MXU operand
    """
    C = x_ref.shape[1]
    W = x_ref.shape[3]
    CP = stage_ref.shape[1]
    P = CP // C
    R = x_ref.shape[2] // P
    nw = W // P
    M = R * nw

    # --- gather: one 2-D XLU transpose per patch-row slab ---------------------
    # slab (C, P, W) -> merge (c, kh) -> (C*P, W) -> transpose -> (W, C*P).
    # Stage row index r*W + j*P + kw == (r*nw + j)*P + kw == m*P + kw.
    def gather(r):
        slab = x_ref[0, :, pl.ds(r * P, P), :]                # (C, P, W)
        slab = slab.reshape(CP, W).astype(jnp.float32)        # (C*P, W)
        stage_ref[pl.ds(r * W, W), :] = slab.T                # (W, C*P)

    if R <= 16:
        for r in range(R):        # small: unroll (LLO scheduling visibility)
            gather(r)
    else:
        @pl.loop(0, R)            # large: bound code size / register pressure
        def _(r):
            gather(r)

    # --- de-interleave kw ONCE into unit-stride lane blocks of the operand ----
    # a[m, kw*CP + (c*P + kh)] = stage[m*P + kw, c*P + kh]
    for kw in range(P):
        a_ref[:, pl.ds(kw * CP, CP)] = (
            stage_ref[pl.ds(kw, M, stride=P), :].astype(jnp.bfloat16))

    # --- single full-K MXU matmul, bias fused in the epilogue -----------------
    out = jnp.dot(a_ref[...], w_ref[...], preferred_element_type=jnp.float32)
    o_ref[0, 0] = (out + b_ref[...]).astype(o_ref.dtype)


def _const_block_spec(shape):
    """Whole-array, VMEM-resident spec; single-buffered where supported."""
    index_map = lambda b, g: (0,) * len(shape)
    try:
        return pl.BlockSpec(shape, index_map, pipeline_mode=pl.Buffered(1))
    except TypeError:  # older jax without pipeline_mode: default double-buffer
        return pl.BlockSpec(shape, index_map)


@functools.partial(jax.jit, static_argnames=("patch_size",))
def patch_projector(x, weight, bias, *, patch_size):
    """x: (B, C, H, W) NCHW; weight: (E, C, P, P) OIHW; bias: (E,).

    Returns (B, num_patches, E) == PyTorch Patch_projector.forward(x).
    """
    B, C, H, W = x.shape
    P = patch_size
    E = weight.shape[0]
    nh, nw = H // P, W // P
    num_patches = nh * nw

    # A stride==kernel conv silently drops ragged borders; crop to match.
    if H != nh * P or W != nw * P:
        x = x[:, :, :nh * P, :nw * P]
        H, W = nh * P, nw * P

    CP = C * P
    K = CP * P                                  # full contraction depth
    E_pad = ((E + 127) // 128) * 128            # lane-dense output stores

    # Tiny host-side reorder of the *weight* (never the big activation):
    # (E, C, kh, kw) -> (kw, c, kh, e) -> (K, E_pad) bf16; k = kw*C*P + c*P + kh.
    w2 = jnp.transpose(weight, (3, 1, 2, 0)).reshape(K, E)
    b2 = bias
    if E_pad != E:
        w2 = jnp.pad(w2, ((0, 0), (0, E_pad - E)))
        b2 = jnp.pad(b2, (0, E_pad - E))
    w2 = w2.astype(jnp.bfloat16)
    b2 = b2.reshape(1, E_pad).astype(jnp.float32)

    # --- generation-aware tile (R patch-rows per grid step) selection ---------
    try:
        vmem_cap = int(pltpu.get_tpu_info().vmem_capacity_bytes)
    except Exception:
        vmem_cap = 64 * 1024 * 1024          # v7x per-TensorCore (smallest)
    budget = int(0.60 * vmem_cap)            # headroom for compiler scratch

    in_item = jnp.dtype(x.dtype).itemsize
    out_item = in_item

    def resident_bytes(r):
        m = r * nw
        return (C * r * P * W * in_item * 2      # input block, double-buffered
                + K * E_pad * 2                  # bf16 weight, single-buffered
                + E_pad * 4                      # bias
                + m * E_pad * out_item * 2       # output block, double-buffered
                + m * P * CP * 4                 # f32 staging scratch
                + m * K * 2)                     # bf16 matmul operand

    candidates = [r for r in range(1, nh + 1)
                  if nh % r == 0 and ((r * P) % 8 == 0 or r == nh)]
    fitting = [r for r in candidates if resident_bytes(r) <= budget]
    if not fitting:
        fitting = [min(candidates)]
    if B == 1:
        # v7x has 2 TensorCores: keep >= 2 grid steps so both get work.
        multi = [r for r in fitting if nh // r >= 2]
        if multi:
            fitting = multi
    R = max(fitting)
    G = nh // R
    M = R * nw

    vmem_limit = int(min(0.85 * vmem_cap,
                         max(1.4 * resident_bytes(R) + (4 << 20), 32 << 20)))

    out4 = pl.pallas_call(
        _patch_proj_kernel,
        out_shape=jax.ShapeDtypeStruct((B, G, M, E_pad), x.dtype),
        grid=(B, G),
        in_specs=[
            pl.BlockSpec((1, C, R * P, W), lambda b, g: (b, 0, g, 0)),
            _const_block_spec((K, E_pad)),        # weight: VMEM-resident
            _const_block_spec((1, E_pad)),        # bias
        ],
        out_specs=pl.BlockSpec((1, 1, M, E_pad), lambda b, g: (b, g, 0, 0)),
        scratch_shapes=[
            pltpu.VMEM((M * P, CP), jnp.float32),     # transposed staging
            pltpu.VMEM((M, K), jnp.bfloat16),         # unit-stride MXU operand
        ],
        compiler_params=pltpu.CompilerParams(
            dimension_semantics=("parallel", "parallel"),
            vmem_limit_bytes=vmem_limit,
        ),
    )(x, w2, b2)

    out = out4.reshape(B, num_patches, E_pad)
    if E_pad != E:
        out = out[:, :, :E]
    return out


def _reference(x, weight, bias, patch_size):
    """Pure-JAX reference: lax conv (NCHW) + flatten/transpose, like PyTorch."""
    y = lax.conv_general_dilated(
        x, weight,
        window_strides=(patch_size, patch_size),
        padding="VALID",
        dimension_numbers=("NCHW", "OIHW", "NCHW"),
    ) + bias.reshape(1, -1, 1, 1)
    B, Cc, Hh, Ww = y.shape
    return y.reshape(B, Cc, Hh * Ww).transpose(0, 2, 1)


if __name__ == "__main__":
    # Small, module-consistent shapes: B=2, in_ch=4, 32x32 image, patch=8, embed=32.
    B, C, H, W = 2, 4, 32, 32
    P, E = 8, 32

    key = jax.random.PRNGKey(0)
    kx, kw_, kb = jax.random.split(key, 3)
    x = jax.random.normal(kx, (B, C, H, W), dtype=jnp.float32)
    # deterministic parameter init (synthetic; mimics Conv2d weight/bias shapes)
    fan_in = C * P * P
    bound = 1.0 / (fan_in ** 0.5)
    weight = jax.random.uniform(kw_, (E, C, P, P), jnp.float32, -bound, bound)
    bias = jax.random.uniform(kb, (E,), jnp.float32, -bound, bound)

    out = patch_projector(x, weight, bias, patch_size=P)
    out = jax.block_until_ready(out)

    ref = _reference(x, weight, bias, P)
    assert out.shape == (B, (H // P) * (W // P), E), out.shape
    # bf16 MXU inputs (f32 accumulation) -> relaxed tolerance vs the f32 reference.
    max_err = float(jnp.abs(out - ref).max())
    assert jnp.allclose(out, ref, atol=3e-2, rtol=3e-2), max_err

    print("KERNEL_OK")
</pallas_src>

<mosaic_0001>
module attributes {stable_mosaic.version = 11 : i64} {
  func.func @_patch_proj_kernel(%arg0: i32, %arg1: i32, %arg2: memref<1x4x32x32xf32, #tpu.memory_space<vmem>>, %arg3: memref<256x128xbf16, #tpu.memory_space<vmem>>, %arg4: memref<1x128xf32, #tpu.memory_space<vmem>>, %arg5: memref<1x1x16x128xf32, #tpu.memory_space<vmem>>, %arg6: memref<128x32xf32, #tpu.memory_space<vmem>>, %arg7: memref<16x256xbf16, #tpu.memory_space<vmem>>) attributes {dimension_semantics = [#tpu.dimension_semantics<parallel>, #tpu.dimension_semantics<parallel>], iteration_bounds = array<i64: 2, 1>, scalar_prefetch = 0 : i64, scratch_operands = 2 : i64, tpu.core_type = #tpu.core_type<tc>, window_params = [{transform_indices = @transform_0, window_bounds = array<i64: 1, 4, 32, 32>}, {pipeline_mode = #tpu.pipeline_mode<synchronous>, transform_indices = @transform_1, window_bounds = array<i64: 256, 128>}, {pipeline_mode = #tpu.pipeline_mode<synchronous>, transform_indices = @transform_2, window_bounds = array<i64: 1, 128>}, {transform_indices = @transform_3, window_bounds = array<i64: 1, 1, 16, 128>}]} {
    %c0 = arith.constant 0 : index
    %c0_0 = arith.constant 0 : index
    %c0_1 = arith.constant 0 : index
    %c0_2 = arith.constant 0 : index
    %0 = vector.load %arg2[%c0, %c0_0, %c0_1, %c0_2] : memref<1x4x32x32xf32, #tpu.memory_space<vmem>>, vector<1x4x8x32xf32>
    %1 = vector.shape_cast %0 : vector<1x4x8x32xf32> to vector<4x8x32xf32>
    %2 = vector.shape_cast %1 : vector<4x8x32xf32> to vector<32x32xf32>
    %3 = tpu.transpose %2, [1, 0] : vector<32x32xf32> -> vector<32x32xf32>
    %c0_3 = arith.constant 0 : index
    %c0_4 = arith.constant 0 : index
    %4 = vector.load %arg6[%c0_3, %c0_4] : memref<128x32xf32, #tpu.memory_space<vmem>>, vector<32x32xf32>
    tpu.vector_store %arg6[%c0_3, %c0_4], %3 {strides = array<i32>} : memref<128x32xf32, #tpu.memory_space<vmem>>, vector<32x32xf32>,
    %c0_5 = arith.constant 0 : index
    %c0_6 = arith.constant 0 : index
    %c8 = arith.constant 8 : index
    %c0_7 = arith.constant 0 : index
    %5 = vector.load %arg2[%c0_5, %c0_6, %c8, %c0_7] : memref<1x4x32x32xf32, #tpu.memory_space<vmem>>, vector<1x4x8x32xf32>
    %6 = vector.shape_cast %5 : vector<1x4x8x32xf32> to vector<4x8x32xf32>
    %7 = vector.shape_cast %6 : vector<4x8x32xf32> to vector<32x32xf32>
    %8 = tpu.transpose %7, [1, 0] : vector<32x32xf32> -> vector<32x32xf32>
    %c32 = arith.constant 32 : index
    %c0_8 = arith.constant 0 : index
    %9 = vector.load %arg6[%c32, %c0_8] : memref<128x32xf32, #tpu.memory_space<vmem>>, vector<32x32xf32>
    tpu.vector_store %arg6[%c32, %c0_8], %8 {strides = array<i32>} : memref<128x32xf32, #tpu.memory_space<vmem>>, vector<32x32xf32>,
    %c0_9 = arith.constant 0 : index
    %c0_10 = arith.constant 0 : index
    %c16 = arith.constant 16 : index
    %c0_11 = arith.constant 0 : index
    %10 = vector.load %arg2[%c0_9, %c0_10, %c16, %c0_11] : memref<1x4x32x32xf32, #tpu.memory_space<vmem>>, vector<1x4x8x32xf32>
    %11 = vector.shape_cast %10 : vector<1x4x8x32xf32> to vector<4x8x32xf32>
    %12 = vector.shape_cast %11 : vector<4x8x32xf32> to vector<32x32xf32>
    %13 = tpu.transpose %12, [1, 0] : vector<32x32xf32> -> vector<32x32xf32>
    %c64 = arith.constant 64 : index
    %c0_12 = arith.constant 0 : index
    %14 = vector.load %arg6[%c64, %c0_12] : memref<128x32xf32, #tpu.memory_space<vmem>>, vector<32x32xf32>
    tpu.vector_store %arg6[%c64, %c0_12], %13 {strides = array<i32>} : memref<128x32xf32, #tpu.memory_space<vmem>>, vector<32x32xf32>,
    %c0_13 = arith.constant 0 : index
    %c0_14 = arith.constant 0 : index
    %c24 = arith.constant 24 : index
    %c0_15 = arith.constant 0 : index
    %15 = vector.load %arg2[%c0_13, %c0_14, %c24, %c0_15] : memref<1x4x32x32xf32, #tpu.memory_space<vmem>>, vector<1x4x8x32xf32>
    %16 = vector.shape_cast %15 : vector<1x4x8x32xf32> to vector<4x8x32xf32>
    %17 = vector.shape_cast %16 : vector<4x8x32xf32> to vector<32x32xf32>
    %18 = tpu.transpose %17, [1, 0] : vector<32x32xf32> -> vector<32x32xf32>
    %c96 = arith.constant 96 : index
    %c0_16 = arith.constant 0 : index
    %19 = vector.load %arg6[%c96, %c0_16] : memref<128x32xf32, #tpu.memory_space<vmem>>, vector<32x32xf32>
    tpu.vector_store %arg6[%c96, %c0_16], %18 {strides = array<i32>} : memref<128x32xf32, #tpu.memory_space<vmem>>, vector<32x32xf32>,
    %c0_17 = arith.constant 0 : index
    %c0_18 = arith.constant 0 : index
    %20 = tpu.strided_load %arg6[%c0_17, %c0_18] {strides = array<i32: 8, 1>} : memref<128x32xf32, #tpu.memory_space<vmem>>, vector<16x32xf32>
    %21 = arith.truncf %20 : vector<16x32xf32> to vector<16x32xbf16>
    %c0_19 = arith.constant 0 : index
    %c0_20 = arith.constant 0 : index
    %22 = vector.load %arg7[%c0_19, %c0_20] : memref<16x256xbf16, #tpu.memory_space<vmem>>, vector<16x32xbf16>
    tpu.vector_store %arg7[%c0_19, %c0_20], %21 {strides = array<i32>} : memref<16x256xbf16, #tpu.memory_space<vmem>>, vector<16x32xbf16>,
    %c1 = arith.constant 1 : index
    %c0_21 = arith.constant 0 : index
    %23 = tpu.strided_load %arg6[%c1, %c0_21] {strides = array<i32: 8, 1>} : memref<128x32xf32, #tpu.memory_space<vmem>>, vector<16x32xf32>
    %24 = arith.truncf %23 : vector<16x32xf32> to vector<16x32xbf16>
    %c0_22 = arith.constant 0 : index
    %c32_23 = arith.constant 32 : index
    %25 = vector.load %arg7[%c0_22, %c32_23] : memref<16x256xbf16, #tpu.memory_space<vmem>>, vector<16x32xbf16>
    tpu.vector_store %arg7[%c0_22, %c32_23], %24 {strides = array<i32>} : memref<16x256xbf16, #tpu.memory_space<vmem>>, vector<16x32xbf16>,
    %c2 = arith.constant 2 : index
    %c0_24 = arith.constant 0 : index
    %26 = tpu.strided_load %arg6[%c2, %c0_24] {strides = array<i32: 8, 1>} : memref<128x32xf32, #tpu.memory_space<vmem>>, vector<16x32xf32>
    %27 = arith.truncf %26 : vector<16x32xf32> to vector<16x32xbf16>
    %c0_25 = arith.constant 0 : index
    %c64_26 = arith.constant 64 : index
    %28 = vector.load %arg7[%c0_25, %c64_26] : memref<16x256xbf16, #tpu.memory_space<vmem>>, vector<16x32xbf16>
    tpu.vector_store %arg7[%c0_25, %c64_26], %27 {strides = array<i32>} : memref<16x256xbf16, #tpu.memory_space<vmem>>, vector<16x32xbf16>,
    %c3 = arith.constant 3 : index
    %c0_27 = arith.constant 0 : index
    %29 = tpu.strided_load %arg6[%c3, %c0_27] {strides = array<i32: 8, 1>} : memref<128x32xf32, #tpu.memory_space<vmem>>, vector<16x32xf32>
    %30 = arith.truncf %29 : vector<16x32xf32> to vector<16x32xbf16>
    %c0_28 = arith.constant 0 : index
    %c96_29 = arith.constant 96 : index
    %31 = vector.load %arg7[%c0_28, %c96_29] : memref<16x256xbf16, #tpu.memory_space<vmem>>, vector<16x32xbf16>
    tpu.vector_store %arg7[%c0_28, %c96_29], %30 {strides = array<i32>} : memref<16x256xbf16, #tpu.memory_space<vmem>>, vector<16x32xbf16>,
    %c4 = arith.constant 4 : index
    %c0_30 = arith.constant 0 : index
    %32 = tpu.strided_load %arg6[%c4, %c0_30] {strides = array<i32: 8, 1>} : memref<128x32xf32, #tpu.memory_space<vmem>>, vector<16x32xf32>
    %33 = arith.truncf %32 : vector<16x32xf32> to vector<16x32xbf16>
    %c0_31 = arith.constant 0 : index
    %c128 = arith.constant 128 : index
    %34 = vector.load %arg7[%c0_31, %c128] : memref<16x256xbf16, #tpu.memory_space<vmem>>, vector<16x32xbf16>
    tpu.vector_store %arg7[%c0_31, %c128], %33 {strides = array<i32>} : memref<16x256xbf16, #tpu.memory_space<vmem>>, vector<16x32xbf16>,
    %c5 = arith.constant 5 : index
    %c0_32 = arith.constant 0 : index
    %35 = tpu.strided_load %arg6[%c5, %c0_32] {strides = array<i32: 8, 1>} : memref<128x32xf32, #tpu.memory_space<vmem>>, vector<16x32xf32>
    %36 = arith.truncf %35 : vector<16x32xf32> to vector<16x32xbf16>
    %c0_33 = arith.constant 0 : index
    %c160 = arith.constant 160 : index
    %37 = vector.load %arg7[%c0_33, %c160] : memref<16x256xbf16, #tpu.memory_space<vmem>>, vector<16x32xbf16>
    tpu.vector_store %arg7[%c0_33, %c160], %36 {strides = array<i32>} : memref<16x256xbf16, #tpu.memory_space<vmem>>, vector<16x32xbf16>,
    %c6 = arith.constant 6 : index
    %c0_34 = arith.constant 0 : index
    %38 = tpu.strided_load %arg6[%c6, %c0_34] {strides = array<i32: 8, 1>} : memref<128x32xf32, #tpu.memory_space<vmem>>, vector<16x32xf32>
    %39 = arith.truncf %38 : vector<16x32xf32> to vector<16x32xbf16>
    %c0_35 = arith.constant 0 : index
    %c192 = arith.constant 192 : index
    %40 = vector.load %arg7[%c0_35, %c192] : memref<16x256xbf16, #tpu.memory_space<vmem>>, vector<16x32xbf16>
    tpu.vector_store %arg7[%c0_35, %c192], %39 {strides = array<i32>} : memref<16x256xbf16, #tpu.memory_space<vmem>>, vector<16x32xbf16>,
    %c7 = arith.constant 7 : index
    %c0_36 = arith.constant 0 : index
    %41 = tpu.strided_load %arg6[%c7, %c0_36] {strides = array<i32: 8, 1>} : memref<128x32xf32, #tpu.memory_space<vmem>>, vector<16x32xf32>
    %42 = arith.truncf %41 : vector<16x32xf32> to vector<16x32xbf16>
    %c0_37 = arith.constant 0 : index
    %c224 = arith.constant 224 : index
    %43 = vector.load %arg7[%c0_37, %c224] : memref<16x256xbf16, #tpu.memory_space<vmem>>, vector<16x32xbf16>
    tpu.vector_store %arg7[%c0_37, %c224], %42 {strides = array<i32>} : memref<16x256xbf16, #tpu.memory_space<vmem>>, vector<16x32xbf16>,
    %c0_38 = arith.constant 0 : index
    %c0_39 = arith.constant 0 : index
    %44 = vector.load %arg7[%c0_38, %c0_39] : memref<16x256xbf16, #tpu.memory_space<vmem>>, vector<16x256xbf16>
    %c0_40 = arith.constant 0 : index
    %c0_41 = arith.constant 0 : index
    %45 = vector.load %arg3[%c0_40, %c0_41] : memref<256x128xbf16, #tpu.memory_space<vmem>>, vector<256x128xbf16>
    %cst = arith.constant dense<0.000000e+00> : vector<16x128xf32>
    %46 = tpu.matmul %44, %45, %cst {dimension_numbers = #tpu.dot_dimension_numbers<[1], [0], [0], [1], [0, 0, 1, 1], [], []>} : vector<16x256xbf16>, vector<256x128xbf16>, vector<16x128xf32> -> vector<16x128xf32>
    %c0_42 = arith.constant 0 : index
    %c0_43 = arith.constant 0 : index
    %47 = vector.load %arg4[%c0_42, %c0_43] : memref<1x128xf32, #tpu.memory_space<vmem>>, vector<1x128xf32>
    %48 = vector.broadcast %47 : vector<1x128xf32> to vector<16x128xf32>
    %49 = arith.addf %46, %48 : vector<16x128xf32>
    %c0_44 = arith.constant 0 : index
    %c0_45 = arith.constant 0 : index
    %c0_46 = arith.constant 0 : index
    %c0_47 = arith.constant 0 : index
    %50 = vector.load %arg5[%c0_44, %c0_45, %c0_46, %c0_47] : memref<1x1x16x128xf32, #tpu.memory_space<vmem>>, vector<1x1x16x128xf32>
    %51 = vector.shape_cast %50 : vector<1x1x16x128xf32> to vector<16x128xf32>
    %52 = vector.shape_cast %49 : vector<16x128xf32> to vector<1x1x16x128xf32>
    tpu.vector_store %arg5[%c0_44, %c0_45, %c0_46, %c0_47], %52 {strides = array<i32>} : memref<1x1x16x128xf32, #tpu.memory_space<vmem>>, vector<1x1x16x128xf32>,
    return
  }
  func.func @transform_0(%arg0: i32, %arg1: i32) -> (i32, i32, i32, i32) {
    %c0_i32 = arith.constant 0 : i32
    %c0_i32_0 = arith.constant 0 : i32
    %c0_i32_1 = arith.constant 0 : i32
    return %arg0, %c0_i32, %arg1, %c0_i32_0 : i32, i32, i32, i32
  }
  func.func @transform_1(%arg0: i32, %arg1: i32) -> (i32, i32) {
    %c0_i32 = arith.constant 0 : i32
    %c0_i32_0 = arith.constant 0 : i32
    %c0_i32_1 = arith.constant 0 : i32
    return %c0_i32, %c0_i32_0 : i32, i32
  }
  func.func @transform_2(%arg0: i32, %arg1: i32) -> (i32, i32) {
    %c0_i32 = arith.constant 0 : i32
    %c0_i32_0 = arith.constant 0 : i32
    %c0_i32_1 = arith.constant 0 : i32
    return %c0_i32, %c0_i32_0 : i32, i32
  }
  func.func @transform_3(%arg0: i32, %arg1: i32) -> (i32, i32, i32, i32) {
    %c0_i32 = arith.constant 0 : i32
    %c0_i32_0 = arith.constant 0 : i32
    %c0_i32_1 = arith.constant 0 : i32
    return %arg0, %arg1, %c0_i32, %c0_i32_0 : i32, i32, i32, i32
  }
}

</mosaic_0001>

<llo_original>
// kernel: patch_projector.1
$region0: #{patch_projector.1}
  #allocation0 [shape = 'u32[]', space=smem, size = 0x4, offset = 0x4, fixed_abs, tag = 'smem constant byte address 0x4 - core index']
  #allocation1 [shape = 'u32[72,128]{1,0:T(1,128)}', space=vmem, size = 0x9000, scoped, tag = 'internal scratch']
  #allocation2 [shape = 'f32[128,32]{1,0:T(8,128)}', space=vmem, size = 0x10000, scoped, tag = 'scratch operand']
  #allocation3 [shape = 'bf16[16,256]{1,0:T(8,128)(2,1)}', space=vmem, size = 0x2000, scoped, tag = 'scratch operand']
  %s0 = inlined_call_operand.vmem [shape: f32[2,4,32,32], index: 0, kind: input, shape index: {}]
  %s1 = inlined_call_operand.vmem [shape: bf16[256,128], index: 1, kind: input, shape index: {}]
  %s2 = inlined_call_operand.vmem [shape: f32[1,128], index: 2, kind: input, shape index: {}]
  %s3 = inlined_call_operand.hbm [shape: f32[2,1,16,128], index: 3, kind: output, shape index: {}]
  %s4 = sld [smem:[#allocation0]]
  $region45: #{patch_projector.1} parent=0
    _
  %s6 = ssub.s32 1, %s4
  %s7 = scalar_select 0, %s6, %s4
  $region1: #{patch_projector.1} parent=0
    #allocation4 [shape = 'u8[16384]{0}', space=vmem, size = 0x4000, scoped, tag = 'output window, operand 0']
    #allocation5 [shape = 's32[2]{0}', space=sflag, size = 0x8, scoped, tag = 'scoped memory for patch_projector.1']
    %8 = vsyncpa [#allocation5], 0
    %s9 = scalar_lea.sflag [#allocation5], 1
    %10 = vsyncpa %s9, 0
    loop: start=0, step=1, limit=4
    $region2: #{patch_projector.1} parent=1 // loop_pre_header
      _
    $region3: #{patch_projector.1} parent=1 // loop_header
      %s12 = sphi 0, %s16
      %p13 = scmp.ge.s32.totalorder %s12, 4
      %s19 = sphi 0, %s31
      %s20 = sphi 0, %s27
      %s21 = sphi 0, %s19
      %s22 = sphi 0, %s20
      %s23 = sphi 0, %s21
      %s24 = sphi 0, %s22
      %s36 = sphi 0, %s38
      %s39 = sphi 0, %s36
      %s40 = sphi 0, %s39
      %s56 = sphi 0, %s40
      %s60 = sphi 0, %s60
      %s62 = sphi 0, %s60
      %s63 = sphi 0, %s62
      %s77 = sphi 0, %s63
      %s81 = sphi 0, %s81
      %s83 = sphi 0, %s81
      %s84 = sphi 0, %s83
      %s98 = sphi 0, %s84
      %s106 = sphi 0, %s108
      %s109 = sphi 0, %s106
      %s110 = sphi 0, %s109
      %s126 = sphi 0, %s110
    $region4: #{patch_projector.1} parent=1 // loop_header_branch
      %15 = sbr.rel (%p13) target = $region8
    $region5: #{patch_projector.1} parent=1 // loop_body
      %s17 = ssub.s32 %s12, 1
      %s18 = ssub.s32 %s12, 2
      %s25 = sadd.s32 1, %s20
      %p26 = scmp.ge.s32.totalorder %s25, 1
      %s27 = scalar_select %p26, 0, %s25
      %s28 = sadd.s32 1, %s19
      %s29 = scalar_select %p26, %s28, %s19
      %p30 = scmp.ge.s32.totalorder %s29, 2
      %s31 = scalar_select %p30, 0, %s29
      %s32 = ssub.s32 %s19, %s31
      %s33 = ssub.s32 %s20, %s27
      %s34 = sor.u32 %s32, %s33
      %p35 = scmp.eq.s32.totalorder %s34, 0
      %s37 = sadd.s32 %s36, 1
      %s38 = scalar_select %p35, %s36, %s37
      %p41 = pneg %p35
      %p42 = scmp.eq.s32.totalorder %s12, 1
      %p43 = por %p41, %p42
      %p44 = scmp.ne.s32.totalorder %s36, %s39
      %p45 = scmp.eq.s32.totalorder %s12, 0
      %p46 = por %p44, %p45
      %p47 = scmp.ne.s32.totalorder %s36, %s39
      %p48 = scmp.eq.s32.totalorder %s17, 1
      %p49 = por %p47, %p48
      %p50 = scmp.ne.s32.totalorder %s39, %s40
      %p51 = scmp.eq.s32.totalorder %s17, 0
      %p52 = por %p50, %p51
      %p53 = scmp.ne.s32.totalorder %s39, %s40
      %p54 = scmp.eq.s32.totalorder %s18, 1
      %p55 = por %p53, %p54
      %p57 = scmp.ne.s32.totalorder %s40, %s56
      %p58 = scmp.eq.s32.totalorder %s18, 0
      %p59 = por %p57, %p58
      %s61 = sadd.s32 %s60, 1
      %p64 = scmp.eq.s32.totalorder %s12, 1
      %p65 = scmp.ne.s32.totalorder %s60, %s62
      %p66 = scmp.eq.s32.totalorder %s12, 0
      %p67 = por %p65, %p66
      %p68 = scmp.ne.s32.totalorder %s60, %s62
      %p69 = scmp.eq.s32.totalorder %s17, 1
      %p70 = por %p68, %p69
      %p71 = scmp.ne.s32.totalorder %s62, %s63
      %p72 = scmp.eq.s32.totalorder %s17, 0
      %p73 = por %p71, %p72
      %p74 = scmp.ne.s32.totalorder %s62, %s63
      %p75 = scmp.eq.s32.totalorder %s18, 1
      %p76 = por %p74, %p75
      %p78 = scmp.ne.s32.totalorder %s63, %s77
      %p79 = scmp.eq.s32.totalorder %s18, 0
      %p80 = por %p78, %p79
      %s82 = sadd.s32 %s81, 1
      %p85 = scmp.eq.s32.totalorder %s12, 1
      %p86 = scmp.ne.s32.totalorder %s81, %s83
      %p87 = scmp.eq.s32.totalorder %s12, 0
      %p88 = por %p86, %p87
      %p89 = scmp.ne.s32.totalorder %s81, %s83
      %p90 = scmp.eq.s32.totalorder %s17, 1
      %p91 = por %p89, %p90
      %p92 = scmp.ne.s32.totalorder %s83, %s84
      %p93 = scmp.eq.s32.totalorder %s17, 0
      %p94 = por %p92, %p93
      %p95 = scmp.ne.s32.totalorder %s83, %s84
      %p96 = scmp.eq.s32.totalorder %s18, 1
      %p97 = por %p95, %p96
      %p99 = scmp.ne.s32.totalorder %s84, %s98
      %p100 = scmp.eq.s32.totalorder %s18, 0
      %p101 = por %p99, %p100
      %s102 = ssub.s32 %s19, %s31
      %s103 = ssub.s32 %s20, %s27
      %s104 = sor.u32 %s102, %s103
      %p105 = scmp.eq.s32.totalorder %s104, 0
      %s107 = sadd.s32 %s106, 1
      %s108 = scalar_select %p105, %s106, %s107
      %p111 = pneg %p105
      %p112 = scmp.eq.s32.totalorder %s12, 1
      %p113 = por %p111, %p112
      %p114 = scmp.ne.s32.totalorder %s106, %s109
      %p115 = scmp.eq.s32.totalorder %s12, 0
      %p116 = por %p114, %p115
      %p117 = scmp.ne.s32.totalorder %s106, %s109
      %p118 = scmp.eq.s32.totalorder %s17, 1
      %p119 = por %p117, %p118
      %p120 = scmp.ne.s32.totalorder %s109, %s110
      %p121 = scmp.eq.s32.totalorder %s17, 0
      %p122 = por %p120, %p121
      %p123 = scmp.ne.s32.totalorder %s109, %s110
      %p124 = scmp.eq.s32.totalorder %s18, 1
      %p125 = por %p123, %p124
      %p127 = scmp.ne.s32.totalorder %s110, %s126
      %p128 = scmp.eq.s32.totalorder %s18, 0
      %p129 = por %p127, %p128
      %p130 = scmp.le.s32.totalorder 1, %s12
      %p131 = scmp.lt.s32.totalorder %s12, 3
      %p132 = pnand %p130, %p131
      %p133 = pneg %p132
      // Predicated region
      $region9: #{patch_projector.1} parent=5 // pred_check
        _
      $region10: #{patch_projector.1} parent=5 // pred_check_branch
        %135 = sbr.rel (%p132) target = $region12
      $region11: #{patch_projector.1} parent=5 // pred_region
        %s136 = ssub.s32 %s12, 1
        // Predicated region
        $region13: #{patch_projector.1} parent=11 // pred_check
          %p137 = pneg %p73
        $region14: #{patch_projector.1} parent=11 // pred_check_branch
          %139 = sbr.rel (%p137) target = $region16
        $region15: #{patch_projector.1} parent=11 // pred_region
          _
        $region16: #{patch_projector.1} parent=11 // pred_fallthru
          _
        // Predicated region
        $region17: #{patch_projector.1} parent=11 // pred_check
          %p140 = pneg %p94
        $region18: #{patch_projector.1} parent=11 // pred_check_branch
          %142 = sbr.rel (%p140) target = $region20
        $region19: #{patch_projector.1} parent=11 // pred_region
          _
        $region20: #{patch_projector.1} parent=11 // pred_fallthru
          _
      $region12: #{patch_projector.1} parent=5 // pred_fallthru
        _
      %p143 = scmp.lt.s32.totalorder %s12, 2
      // Predicated region
      $region21: #{patch_projector.1} parent=5 // pred_check
        %p144 = pneg %p143
      $region22: #{patch_projector.1} parent=5 // pred_check_branch
        %146 = sbr.rel (%p144) target = $region24
      $region23: #{patch_projector.1} parent=5 // pred_region
        // Predicated region
        $region25: #{patch_projector.1} parent=23 // pred_check
          %p147 = pneg %p46
        $region26: #{patch_projector.1} parent=23 // pred_check_branch
          %149 = sbr.rel (%p147) target = $region28
        $region27: #{patch_projector.1} parent=23 // pred_region
          %s150 = smul.u32 4, %s20
          %p151 = scmp.lt.s32.totalorder %s19, 1
          %s152 = scalar_select %p151, %s19, 1
          %p153 = scmp.lt.s32.totalorder %s150, 3
          %s154 = scalar_select %p153, %s150, 3
          %s155 = smul.addr %s152, 16
          %s156 = sadd.s32 %s154, %s155
          %s157 = smul.addr %s156, 8
          %s158 = scalar_lea.vmem %s0, %s157
          %s159 = smul.u32 4, %s20
        $region28: #{patch_projector.1} parent=23 // pred_fallthru
          _
      $region24: #{patch_projector.1} parent=5 // pred_fallthru
        _
      %p160 = scmp.le.s32.totalorder 1, %s12
      %p161 = scmp.lt.s32.totalorder %s12, 3
      %p162 = pnand %p160, %p161
      %p163 = pneg %p162
      // Predicated region
      $region29: #{patch_projector.1} parent=5 // pred_check
        _
      $region30: #{patch_projector.1} parent=5 // pred_check_branch
        %165 = sbr.rel (%p162) target = $region32
      $region31: #{patch_projector.1} parent=5 // pred_region
        %s166 = ssub.s32 %s12, 1
        %s167 = smul.u32 4, %s22
        %p168 = scmp.lt.s32.totalorder %s21, 1
        %s169 = scalar_select %p168, %s21, 1
        %p170 = scmp.lt.s32.totalorder %s167, 3
        %s171 = scalar_select %p170, %s167, 3
        %s172 = smul.addr %s169, 16
        %s173 = sadd.s32 %s171, %s172
        %s174 = smul.addr %s173, 8
        %s175 = scalar_lea.vmem %s0, %s174
        %p176 = pneg %p52
        %p177 = pneg %p49
        %p178 = pneg %p73
        %p179 = pneg %p70
        %p180 = pneg %p94
        %p181 = pneg %p91
        %p182 = pneg %p122
        %p183 = pneg %p119
        %s184 = sand.u32 %s109, 1
        %s185 = scalar_lea.sflag [#allocation5], %s184
        %s186 = sand.u32 %s109, 1
        %s187 = smul.addr %s186, 16
        %s188 = scalar_lea.vmem [#allocation4], %s187
        %s189 = smul.u32 4, %s22
        %p190 = scmp.lt.s32.totalorder %s21, 1
        %s191 = scalar_select %p190, %s21, 1
        %p192 = scmp.lt.s32.totalorder %s189, 3
        %s193 = scalar_select %p192, %s189, 3
        %s194 = smul.addr %s191, 16
        %s195 = sadd.s32 %s193, %s194
        %s196 = smul.addr %s195, 8
        %s197 = scalar_lea.vmem %s0, %s196
        %s198 = smul.u32 4, %s22
        %v199 = vld [vmem:[%s197] sm:$0xff]
        %v200 = vld [vmem:[%s197 + $0x20] sm:$0xff]
        %v201 = vld [vmem:[%s197 + $0x40] sm:$0xff]
        %v202 = vld [vmem:[%s197 + $0x60] sm:$0xff]
        %203 = vxpose.xlu0.b32.start [1/16] %v199, 128
        %204 = vxpose.xlu0.b32.cont [2/16] %v200, 128
        %205 = vxpose.xlu0.b32.cont [3/16] %v201, 128
        %206 = vxpose.xlu0.b32.cont [4/16] %v202, 128
        %207 = vxpose.xlu0.b32.cont [5/16] 0.0, 128
        %208 = vxpose.xlu0.b32.cont [6/16] 0.0, 128
        %209 = vxpose.xlu0.b32.cont [7/16] 0.0, 128
        %210 = vxpose.xlu0.b32.cont [8/16] 0.0, 128
        %211 = vxpose.xlu0.b32.cont [9/16] 0.0, 128
        %212 = vxpose.xlu0.b32.cont [10/16] 0.0, 128
        %213 = vxpose.xlu0.b32.cont [11/16] 0.0, 128
        %214 = vxpose.xlu0.b32.cont [12/16] 0.0, 128
        %215 = vxpose.xlu0.b32.cont [13/16] 0.0, 128
        %216 = vxpose.xlu0.b32.cont [14/16] 0.0, 128
        %217 = vxpose.xlu0.b32.cont [15/16] 0.0, 128
        %218 = vxpose.xlu0.b32.end [16/16] 0.0, 128
        %v219 = vpop.trf.xlu0
        %v220 = vpop.trf.xlu0
        %v221 = vpop.trf.xlu0
        %v222 = vpop.trf.xlu0
        %v223 = vpop.trf.xlu0
        %v224 = vpop.trf.xlu0
        %v225 = vpop.trf.xlu0
        %v226 = vpop.trf.xlu0
        %v227 = vpop.trf.xlu0
        %v228 = vpop.trf.xlu0
        %v229 = vpop.trf.xlu0
        %v230 = vpop.trf.xlu0
        %v231 = vpop.trf.xlu0
        %v232 = vpop.trf.xlu0
        %v233 = vpop.trf.xlu0
        %v234 = vpop.trf.xlu0
        %vm235 = vcmask 261120
        %236 = vst.msk [vmem:[#allocation2] sm:$0xff] %vm235, %v219
        %237 = vst.msk [vmem:[#allocation2 + $0x8] sm:$0xff] %vm235, %v220
        %238 = vst.msk [vmem:[#allocation2 + $0x10] sm:$0xff] %vm235, %v221
        %239 = vst.msk [vmem:[#allocation2 + $0x18] sm:$0xff] %vm235, %v222
        %v240 = vld [vmem:[%s197 + $0x8] sm:$0xff]
        %v241 = vld [vmem:[%s197 + $0x28] sm:$0xff]
        %v242 = vld [vmem:[%s197 + $0x48] sm:$0xff]
        %v243 = vld [vmem:[%s197 + $0x68] sm:$0xff]
        %244 = vxpose.xlu0.b32.start [1/16] %v240, 128
        %245 = vxpose.xlu0.b32.cont [2/16] %v241, 128
        %246 = vxpose.xlu0.b32.cont [3/16] %v242, 128
        %247 = vxpose.xlu0.b32.cont [4/16] %v243, 128
        %248 = vxpose.xlu0.b32.cont [5/16] 0.0, 128
        %249 = vxpose.xlu0.b32.cont [6/16] 0.0, 128
        %250 = vxpose.xlu0.b32.cont [7/16] 0.0, 128
        %251 = vxpose.xlu0.b32.cont [8/16] 0.0, 128
        %252 = vxpose.xlu0.b32.cont [9/16] 0.0, 128
        %253 = vxpose.xlu0.b32.cont [10/16] 0.0, 128
        %254 = vxpose.xlu0.b32.cont [11/16] 0.0, 128
        %255 = vxpose.xlu0.b32.cont [12/16] 0.0, 128
        %256 = vxpose.xlu0.b32.cont [13/16] 0.0, 128
        %257 = vxpose.xlu0.b32.cont [14/16] 0.0, 128
        %258 = vxpose.xlu0.b32.cont [15/16] 0.0, 128
        %259 = vxpose.xlu0.b32.end [16/16] 0.0, 128
        %v260 = vpop.trf.xlu0
        %v261 = vpop.trf.xlu0
        %v262 = vpop.trf.xlu0
        %v263 = vpop.trf.xlu0
        %v264 = vpop.trf.xlu0
        %v265 = vpop.trf.xlu0
        %v266 = vpop.trf.xlu0
        %v267 = vpop.trf.xlu0
        %v268 = vpop.trf.xlu0
        %v269 = vpop.trf.xlu0
        %v270 = vpop.trf.xlu0
        %v271 = vpop.trf.xlu0
        %v272 = vpop.trf.xlu0
        %v273 = vpop.trf.xlu0
        %v274 = vpop.trf.xlu0
        %v275 = vpop.trf.xlu0
        %276 = vst.msk [vmem:[#allocation2 + $0x20] sm:$0xff] %vm235, %v260
        %277 = vst.msk [vmem:[#allocation2 + $0x28] sm:$0xff] %vm235, %v261
        %278 = vst.msk [vmem:[#allocation2 + $0x30] sm:$0xff] %vm235, %v262
        %279 = vst.msk [vmem:[#allocation2 + $0x38] sm:$0xff] %vm235, %v263
        %v280 = vld [vmem:[%s197 + $0x10] sm:$0xff]
        %v281 = vld [vmem:[%s197 + $0x30] sm:$0xff]
        %v282 = vld [vmem:[%s197 + $0x50] sm:$0xff]
        %v283 = vld [vmem:[%s197 + $0x70] sm:$0xff]
        %284 = vxpose.xlu0.b32.start [1/16] %v280, 128
        %285 = vxpose.xlu0.b32.cont [2/16] %v281, 128
        %286 = vxpose.xlu0.b32.cont [3/16] %v282, 128
        %287 = vxpose.xlu0.b32.cont [4/16] %v283, 128
        %288 = vxpose.xlu0.b32.cont [5/16] 0.0, 128
        %289 = vxpose.xlu0.b32.cont [6/16] 0.0, 128
        %290 = vxpose.xlu0.b32.cont [7/16] 0.0, 128
        %291 = vxpose.xlu0.b32.cont [8/16] 0.0, 128
        %292 = vxpose.xlu0.b32.cont [9/16] 0.0, 128
        %293 = vxpose.xlu0.b32.cont [10/16] 0.0, 128
        %294 = vxpose.xlu0.b32.cont [11/16] 0.0, 128
        %295 = vxpose.xlu0.b32.cont [12/16] 0.0, 128
        %296 = vxpose.xlu0.b32.cont [13/16] 0.0, 128
        %297 = vxpose.xlu0.b32.cont [14/16] 0.0, 128
        %298 = vxpose.xlu0.b32.cont [15/16] 0.0, 128
        %299 = vxpose.xlu0.b32.end [16/16] 0.0, 128
        %v300 = vpop.trf.xlu0
        %v301 = vpop.trf.xlu0
        %v302 = vpop.trf.xlu0
        %v303 = vpop.trf.xlu0
        %v304 = vpop.trf.xlu0
        %v305 = vpop.trf.xlu0
        %v306 = vpop.trf.xlu0
        %v307 = vpop.trf.xlu0
        %v308 = vpop.trf.xlu0
        %v309 = vpop.trf.xlu0
        %v310 = vpop.trf.xlu0
        %v311 = vpop.trf.xlu0
        %v312 = vpop.trf.xlu0
        %v313 = vpop.trf.xlu0
        %v314 = vpop.trf.xlu0
        %v315 = vpop.trf.xlu0
        %316 = vst.msk [vmem:[#allocation2 + $0x40] sm:$0xff] %vm235, %v300
        %317 = vst.msk [vmem:[#allocation2 + $0x48] sm:$0xff] %vm235, %v301
        %318 = vst.msk [vmem:[#allocation2 + $0x50] sm:$0xff] %vm235, %v302
        %319 = vst.msk [vmem:[#allocation2 + $0x58] sm:$0xff] %vm235, %v303
        %v320 = vld [vmem:[%s197 + $0x18] sm:$0xff]
        %v321 = vld [vmem:[%s197 + $0x38] sm:$0xff]
        %v322 = vld [vmem:[%s197 + $0x58] sm:$0xff]
        %v323 = vld [vmem:[%s197 + $0x78] sm:$0xff]
        %324 = vxpose.xlu0.b32.start [1/16] %v320, 128
        %325 = vxpose.xlu0.b32.cont [2/16] %v321, 128
        %326 = vxpose.xlu0.b32.cont [3/16] %v322, 128
        %327 = vxpose.xlu0.b32.cont [4/16] %v323, 128
        %328 = vxpose.xlu0.b32.cont [5/16] 0.0, 128
        %329 = vxpose.xlu0.b32.cont [6/16] 0.0, 128
        %330 = vxpose.xlu0.b32.cont [7/16] 0.0, 128
        %331 = vxpose.xlu0.b32.cont [8/16] 0.0, 128
        %332 = vxpose.xlu0.b32.cont [9/16] 0.0, 128
        %333 = vxpose.xlu0.b32.cont [10/16] 0.0, 128
        %334 = vxpose.xlu0.b32.cont [11/16] 0.0, 128
        %335 = vxpose.xlu0.b32.cont [12/16] 0.0, 128
        %336 = vxpose.xlu0.b32.cont [13/16] 0.0, 128
        %337 = vxpose.xlu0.b32.cont [14/16] 0.0, 128
        %338 = vxpose.xlu0.b32.cont [15/16] 0.0, 128
        %339 = vxpose.xlu0.b32.end [16/16] 0.0, 128
        %v340 = vpop.trf.xlu0
        %v341 = vpop.trf.xlu0
        %v342 = vpop.trf.xlu0
        %v343 = vpop.trf.xlu0
        %v344 = vpop.trf.xlu0
        %v345 = vpop.trf.xlu0
        %v346 = vpop.trf.xlu0
        %v347 = vpop.trf.xlu0
        %v348 = vpop.trf.xlu0
        %v349 = vpop.trf.xlu0
        %v350 = vpop.trf.xlu0
        %v351 = vpop.trf.xlu0
        %v352 = vpop.trf.xlu0
        %v353 = vpop.trf.xlu0
        %v354 = vpop.trf.xlu0
        %v355 = vpop.trf.xlu0
        %356 = vst.msk [vmem:[#allocation2 + $0x60] sm:$0xff] %vm235, %v340
        %357 = vst.msk [vmem:[#allocation2 + $0x68] sm:$0xff] %vm235, %v341
        %358 = vst.msk [vmem:[#allocation2 + $0x70] sm:$0xff] %vm235, %v342
        %359 = vst.msk [vmem:[#allocation2 + $0x78] sm:$0xff] %vm235, %v343
        %v360 = vld [vmem:[#allocation2] ss:$8 sm:$0xf]
        %v361 = vld [vmem:[#allocation2] ss:$8 sm:$0xf0]
        %v362 = vor.u32 %v360, %v361
        %s363 = scalar_lea.vmem [#allocation2], 64
        %v364 = vld [vmem:[%s363] ss:$8 sm:$0xf]
        %v365 = vld [vmem:[%s363] ss:$8 sm:$0xf0]
        %v366 = vor.u32 %v364, %v365
        %v367 = vpack.c.bf16 %v362, %v362
        %v368 = vpack.c.bf16 %v366, %v366
        %vm369 = vcmask 257024
        %370 = vst.msk [vmem:[#allocation3] sm:$0xf] %vm369, %v367
        %371 = vst.msk [vmem:[#allocation3 + $0x8] sm:$0xf] %vm369, %v368
        %s372 = scalar_lea.vmem [#allocation2], 1
        %v373 = vld [vmem:[%s372] ss:$8 sm:$0xf]
        %v374 = vld [vmem:[%s372] ss:$8 sm:$0xf0]
        %v375 = vor.u32 %v373, %v374
        %s376 = scalar_lea.vmem [#allocation2], 65
        %v377 = vld [vmem:[%s376] ss:$8 sm:$0xf]
        %v378 = vld [vmem:[%s376] ss:$8 sm:$0xf0]
        %v379 = vor.u32 %v377, %v378
        %v380 = vpack.c.bf16 %v375, %v375
        %v381 = vpack.c.bf16 %v379, %v379
        %384 = vrot.lane.b32.xlu0 %v380, 32
        %v385 = vpop.permute.xlu0 %384
        %386 = vrot.lane.b32.xlu0 %v381, 32
        %v387 = vpop.permute.xlu0 %386
        %vm390 = vcmask 519424
        %391 = vst.msk [vmem:[#allocation3] sm:$0xf] %vm390, %v385
        %392 = vst.msk [vmem:[#allocation3 + $0x8] sm:$0xf] %vm390, %v387
        %s393 = scalar_lea.vmem [#allocation2], 2
        %v394 = vld [vmem:[%s393] ss:$8 sm:$0xf]
        %v395 = vld [vmem:[%s393] ss:$8 sm:$0xf0]
        %v396 = vor.u32 %v394, %v395
        %s397 = scalar_lea.vmem [#allocation2], 66
        %v398 = vld [vmem:[%s397] ss:$8 sm:$0xf]
        %v399 = vld [vmem:[%s397] ss:$8 sm:$0xf0]
        %v400 = vor.u32 %v398, %v399
        %v401 = vpack.c.bf16 %v396, %v396
        %v402 = vpack.c.bf16 %v400, %v400
        %405 = vrot.lane.b32.xlu0 %v401, 64
        %v406 = vpop.permute.xlu0 %405
        %407 = vrot.lane.b32.xlu0 %v402, 64
        %v408 = vpop.permute.xlu0 %407
        %vm411 = vcmask 781824
        %412 = vst.msk [vmem:[#allocation3] sm:$0xf] %vm411, %v406
        %413 = vst.msk [vmem:[#allocation3 + $0x8] sm:$0xf] %vm411, %v408
        %s414 = scalar_lea.vmem [#allocation2], 3
        %v415 = vld [vmem:[%s414] ss:$8 sm:$0xf]
        %v416 = vld [vmem:[%s414] ss:$8 sm:$0xf0]
        %v417 = vor.u32 %v415, %v416
        %s418 = scalar_lea.vmem [#allocation2], 67
        %v419 = vld [vmem:[%s418] ss:$8 sm:$0xf]
        %v420 = vld [vmem:[%s418] ss:$8 sm:$0xf0]
        %v421 = vor.u32 %v419, %v420
        %v422 = vpack.c.bf16 %v417, %v417
        %v423 = vpack.c.bf16 %v421, %v421
        %426 = vrot.lane.b32.xlu0 %v422, 96
        %v427 = vpop.permute.xlu0 %426
        %428 = vrot.lane.b32.xlu0 %v423, 96
        %v429 = vpop.permute.xlu0 %428
        %vm432 = vcmask 1044224
        %433 = vst.msk [vmem:[#allocation3] sm:$0xf] %vm432, %v427
        %434 = vst.msk [vmem:[#allocation3 + $0x8] sm:$0xf] %vm432, %v429
        %s435 = scalar_lea.vmem [#allocation2], 4
        %v436 = vld [vmem:[%s435] ss:$8 sm:$0xf]
        %v437 = vld [vmem:[%s435] ss:$8 sm:$0xf0]
        %v438 = vor.u32 %v436, %v437
        %s439 = scalar_lea.vmem [#allocation2], 68
        %v440 = vld [vmem:[%s439] ss:$8 sm:$0xf]
        %v441 = vld [vmem:[%s439] ss:$8 sm:$0xf0]
        %v442 = vor.u32 %v440, %v441
        %v443 = vpack.c.bf16 %v438, %v438
        %v444 = vpack.c.bf16 %v442, %v442
        %445 = vst.msk [vmem:[#allocation3 + $0x4] sm:$0xf] %vm369, %v443
        %446 = vst.msk [vmem:[#allocation3 + $0xc] sm:$0xf] %vm369, %v444
        %s447 = scalar_lea.vmem [#allocation2], 5
        %v448 = vld [vmem:[%s447] ss:$8 sm:$0xf]
        %v449 = vld [vmem:[%s447] ss:$8 sm:$0xf0]
        %v450 = vor.u32 %v448, %v449
        %s451 = scalar_lea.vmem [#allocation2], 69
        %v452 = vld [vmem:[%s451] ss:$8 sm:$0xf]
        %v453 = vld [vmem:[%s451] ss:$8 sm:$0xf0]
        %v454 = vor.u32 %v452, %v453
        %v455 = vpack.c.bf16 %v450, %v450
        %v456 = vpack.c.bf16 %v454, %v454
        %459 = vrot.lane.b32.xlu0 %v455, 32
        %v460 = vpop.permute.xlu0 %459
        %461 = vrot.lane.b32.xlu0 %v456, 32
        %v462 = vpop.permute.xlu0 %461
        %465 = vst.msk [vmem:[#allocation3 + $0x4] sm:$0xf] %vm390, %v460
        %466 = vst.msk [vmem:[#allocation3 + $0xc] sm:$0xf] %vm390, %v462
        %s467 = scalar_lea.vmem [#allocation2], 6
        %v468 = vld [vmem:[%s467] ss:$8 sm:$0xf]
        %v469 = vld [vmem:[%s467] ss:$8 sm:$0xf0]
        %v470 = vor.u32 %v468, %v469
        %s471 = scalar_lea.vmem [#allocation2], 70
        %v472 = vld [vmem:[%s471] ss:$8 sm:$0xf]
        %v473 = vld [vmem:[%s471] ss:$8 sm:$0xf0]
        %v474 = vor.u32 %v472, %v473
        %v475 = vpack.c.bf16 %v470, %v470
        %v476 = vpack.c.bf16 %v474, %v474
        %479 = vrot.lane.b32.xlu0 %v475, 64
        %v480 = vpop.permute.xlu0 %479
        %481 = vrot.lane.b32.xlu0 %v476, 64
        %v482 = vpop.permute.xlu0 %481
        %485 = vst.msk [vmem:[#allocation3 + $0x4] sm:$0xf] %vm411, %v480
        %486 = vst.msk [vmem:[#allocation3 + $0xc] sm:$0xf] %vm411, %v482
        %s487 = scalar_lea.vmem [#allocation2], 7
        %v488 = vld [vmem:[%s487] ss:$8 sm:$0xf]
        %v489 = vld [vmem:[%s487] ss:$8 sm:$0xf0]
        %v490 = vor.u32 %v488, %v489
        %s491 = scalar_lea.vmem [#allocation2], 71
        %v492 = vld [vmem:[%s491] ss:$8 sm:$0xf]
        %v493 = vld [vmem:[%s491] ss:$8 sm:$0xf0]
        %v494 = vor.u32 %v492, %v493
        %v495 = vpack.c.bf16 %v490, %v490
        %v496 = vpack.c.bf16 %v494, %v494
        %499 = vrot.lane.b32.xlu0 %v495, 96
        %v500 = vpop.permute.xlu0 %499
        %501 = vrot.lane.b32.xlu0 %v496, 96
        %v502 = vpop.permute.xlu0 %501
        %505 = vst.msk [vmem:[#allocation3 + $0x4] sm:$0xf] %vm432, %v500
        %506 = vst.msk [vmem:[#allocation3 + $0xc] sm:$0xf] %vm432, %v502
        %v507 = vld [vmem:[#allocation3] sm:$0xff]
        %v508 = vld [vmem:[#allocation3 + $0x8] sm:$0xff]
        %v509 = vld [vmem:[%s1] sm:$0xf]
        %v510 = vld [vmem:[%s1 + $0x4] sm:$0xf]
        %v511 = vld [vmem:[%s1 + $0x8] sm:$0xf]
        %v512 = vld [vmem:[%s1 + $0xc] sm:$0xf]
        %v513 = vld [vmem:[%s1 + $0x10] sm:$0xf]
        %v514 = vld [vmem:[%s1 + $0x14] sm:$0xf]
        %v515 = vld [vmem:[%s1 + $0x18] sm:$0xf]
        %v516 = vld [vmem:[%s1 + $0x1c] sm:$0xf]
        %v517 = vld [vmem:[%s1 + $0x20] sm:$0xf]
        %v518 = vld [vmem:[%s1 + $0x24] sm:$0xf]
        %v519 = vld [vmem:[%s1 + $0x28] sm:$0xf]
        %v520 = vld [vmem:[%s1 + $0x2c] sm:$0xf]
        %v521 = vld [vmem:[%s1 + $0x30] sm:$0xf]
        %v522 = vld [vmem:[%s1 + $0x34] sm:$0xf]
        %v523 = vld [vmem:[%s1 + $0x38] sm:$0xf]
        %v524 = vld [vmem:[%s1 + $0x3c] sm:$0xf]
        %v525 = vld [vmem:[%s1 + $0x40] sm:$0xf]
        %v526 = vld [vmem:[%s1 + $0x44] sm:$0xf]
        %v527 = vld [vmem:[%s1 + $0x48] sm:$0xf]
        %v528 = vld [vmem:[%s1 + $0x4c] sm:$0xf]
        %v529 = vld [vmem:[%s1 + $0x50] sm:$0xf]
        %v530 = vld [vmem:[%s1 + $0x54] sm:$0xf]
        %v531 = vld [vmem:[%s1 + $0x58] sm:$0xf]
        %v532 = vld [vmem:[%s1 + $0x5c] sm:$0xf]
        %v533 = vld [vmem:[%s1 + $0x60] sm:$0xf]
        %v534 = vld [vmem:[%s1 + $0x64] sm:$0xf]
        %v535 = vld [vmem:[%s1 + $0x68] sm:$0xf]
        %v536 = vld [vmem:[%s1 + $0x6c] sm:$0xf]
        %v537 = vld [vmem:[%s1 + $0x70] sm:$0xf]
        %v538 = vld [vmem:[%s1 + $0x74] sm:$0xf]
        %v539 = vld [vmem:[%s1 + $0x78] sm:$0xf]
        %v540 = vld [vmem:[%s1 + $0x7c] sm:$0xf]
        %v541 = vld [vmem:[%s2] sm:$0x1]
        %v543 = vperm.slane %v541, 0
        %v547 = vunpack.c.l.b16 %v507
        %v548 = vunpack.c.h.b16 %v507
        %v549 = vunpack.c.l.b16 %v508
        %v550 = vunpack.c.h.b16 %v508
        %v551 = vpack.c.b16 %v549, %v547
        %v552 = vpack.c.b16 %v550, %v548
        %v587 = vunpack.c.l.b16 %v509
        %v588 = vunpack.c.l.b16 %v510
        %v589 = vunpack.c.l.b16 %v511
        %v590 = vunpack.c.l.b16 %v512
        %v591 = vunpack.c.l.b16 %v513
        %v592 = vunpack.c.l.b16 %v514
        %v593 = vunpack.c.l.b16 %v515
        %v594 = vunpack.c.l.b16 %v516
        %v595 = vunpack.c.l.b16 %v517
        %v596 = vunpack.c.l.b16 %v518
        %v597 = vunpack.c.l.b16 %v519
        %v598 = vunpack.c.l.b16 %v520
        %v599 = vunpack.c.l.b16 %v521
        %v600 = vunpack.c.l.b16 %v522
        %v601 = vunpack.c.l.b16 %v523
        %v602 = vunpack.c.l.b16 %v524
        %v603 = vunpack.c.l.b16 %v525
        %v604 = vunpack.c.l.b16 %v526
        %v605 = vunpack.c.l.b16 %v527
        %v606 = vunpack.c.l.b16 %v528
        %v607 = vunpack.c.l.b16 %v529
        %v608 = vunpack.c.l.b16 %v530
        %v609 = vunpack.c.l.b16 %v531
        %v610 = vunpack.c.l.b16 %v532
        %v611 = vunpack.c.l.b16 %v533
        %v612 = vunpack.c.l.b16 %v534
        %v613 = vunpack.c.l.b16 %v535
        %v614 = vunpack.c.l.b16 %v536
        %v615 = vunpack.c.l.b16 %v537
        %v616 = vunpack.c.l.b16 %v538
        %v617 = vunpack.c.l.b16 %v539
        %v618 = vunpack.c.l.b16 %v540
        %v619 = vpack.c.b16 %v588, %v587
        %v620 = vpack.c.b16 %v590, %v589
        %v621 = vpack.c.b16 %v592, %v591
        %v622 = vpack.c.b16 %v594, %v593
        %v623 = vpack.c.b16 %v596, %v595
        %v624 = vpack.c.b16 %v598, %v597
        %v625 = vpack.c.b16 %v600, %v599
        %v626 = vpack.c.b16 %v602, %v601
        %v627 = vpack.c.b16 %v604, %v603
        %v628 = vpack.c.b16 %v606, %v605
        %v629 = vpack.c.b16 %v608, %v607
        %v630 = vpack.c.b16 %v610, %v609
        %v631 = vpack.c.b16 %v612, %v611
        %v632 = vpack.c.b16 %v614, %v613
        %v633 = vpack.c.b16 %v616, %v615
        %v634 = vpack.c.b16 %v618, %v617
        %651 = vmatpush.bf16.msra.mxu0 %v626
        %652 = vmatpush.bf16.msra.mxu0 %v625
        %653 = vmatpush.bf16.msra.mxu0 %v624
        %654 = vmatpush.bf16.msra.mxu0 %v623
        %655 = vmatpush.bf16.msra.mxu0 %v622
        %656 = vmatpush.bf16.msra.mxu0 %v621
        %657 = vmatpush.bf16.msra.mxu0 %v620
        %658 = vmatpush.bf16.msra.mxu0 %v619
        %659 = vmatmul.bf16.gmra.mxu0 %v551
        %v660 = vpop.f32.mrf.mxu0
        %v661 = vadd.f32 %v543, %v660
        %v662 = vpop.f32.mrf.mxu0
        %v663 = vadd.f32 %v543, %v662
        %664 = vdwg.mxu0
        %665 = vmatpush.bf16.msra.mxu0 %v634
        %666 = vmatpush.bf16.msra.mxu0 %v633
        %667 = vmatpush.bf16.msra.mxu0 %v632
        %668 = vmatpush.bf16.msra.mxu0 %v631
        %669 = vmatpush.bf16.msra.mxu0 %v630
        %670 = vmatpush.bf16.msra.mxu0 %v629
        %671 = vmatpush.bf16.msra.mxu0 %v628
        %672 = vmatpush.bf16.msra.mxu0 %v627
        %673 = vmatmul.bf16.gmra.mxu0 %v552
        %v674 = vpop.f32.mrf.mxu0
        %v675 = vadd.f32 %v661, %v674
        %v676 = vpop.f32.mrf.mxu0
        %v677 = vadd.f32 %v663, %v676
        %678 = vdwg.mxu0
        %679 = vst [vmem:[%s188] sm:$0xff] %v675
        %680 = vst [vmem:[%s188 + $0x8] sm:$0xff] %v677
        %s681 = sand.u32 %s109, 1
        %s682 = scalar_lea.sflag [#allocation5], %s681
        %s683 = sand.u32 %s109, 1
        %s684 = smul.addr %s683, 16
        %s685 = scalar_lea.vmem [#allocation4], %s684
        // Predicated region
        $region33: #{patch_projector.1} parent=31 // pred_check
          %p686 = pneg %p119
        $region34: #{patch_projector.1} parent=31 // pred_check_branch
          %688 = sbr.rel (%p686) target = $region36
        $region35: #{patch_projector.1} parent=31 // pred_region
          %690 = vsyncadd %s682, 0
          %s691 = smul.addr %s22, 2
          %s692 = smul.addr %s21, 2
          %s693 = sadd.s32 %s691, %s692
          %s694 = smul.addr %s693, 8
          %s695 = scalar_lea.hbm %s3, %s694
          %s696 = sshll.u32 %s685, 4
          %s697 = int_to_ptr.vmem [resolvable:$true] %s696
          %s698 = sshll.u32 %s695, 4
          %s699 = int_to_ptr.hbm [resolvable:$true] %s698
          %704 = dma.vmem_to_hbm [thread:$0]  %s697, 256, %s699, %s682, 128, 128, 8
        $region36: #{patch_projector.1} parent=31 // pred_fallthru
          _
      $region32: #{patch_projector.1} parent=5 // pred_fallthru
        _
      %p705 = scmp.le.s32.totalorder 2, %s12
      // Predicated region
      $region37: #{patch_projector.1} parent=5 // pred_check
        %p706 = pneg %p705
      $region38: #{patch_projector.1} parent=5 // pred_check_branch
        %708 = sbr.rel (%p706) target = $region40
      $region39: #{patch_projector.1} parent=5 // pred_region
        %s709 = ssub.s32 %s12, 2
        // Predicated region
        $region41: #{patch_projector.1} parent=39 // pred_check
          %p710 = pneg %p125
        $region42: #{patch_projector.1} parent=39 // pred_check_branch
          %712 = sbr.rel (%p710) target = $region44
        $region43: #{patch_projector.1} parent=39 // pred_region
          %s713 = sand.u32 %s110, 1
          %s714 = scalar_lea.sflag [#allocation5], %s713
          %s715 = sand.u32 %s110, 1
          %s716 = smul.addr %s715, 16
          %s717 = scalar_lea.vmem [#allocation4], %s716
          %719 = dma.done %s714, 256
        $region44: #{patch_projector.1} parent=39 // pred_fallthru
          _
      $region40: #{patch_projector.1} parent=5 // pred_fallthru
        _
    $region6: #{patch_projector.1} parent=1 // loop_footer
      %s16 = sadd.s32 1, %s12
    $region7: #{patch_projector.1} parent=1 // loop_footer_branch
      %11 = sbr.rel target = $region3
    $region8: #{patch_projector.1} parent=1 // loop_exit
      _
    %720 = vsyncpa [#allocation5], 1
    %s721 = scalar_lea.sflag [#allocation5], 1
    %722 = vsyncpa %s721, 1

</llo_original>
